<compile_context>
chip_gen: v7x
topology: tpu7x:2x2x1
jax: 0.10.0
libtpu: 0.0.40
codegen_flags: <defaults>
</compile_context>

<pallas_src>
import numpy as np
import jax
import jax.numpy as jnp
from jax.experimental import pallas as pl
from jax.experimental.pallas import tpu as pltpu

# ---------------------------------------------------------------------------
# Module hyper-parameters (small, consistent with StagePolicyNetwork.__init__)
# ---------------------------------------------------------------------------
NUM_NODE_FEATURES = 5
EMB_DIMS = {"node": 8, "dag": 8, "glob": 8}
HID_DIMS = [32, 16]                       # mlp_kwargs['hid_dims']
H1, H2 = HID_DIMS
# mlp_kwargs['act_cls'] = 'LeakyReLU' (negative_slope=0.01, PyTorch default)
INPUT_DIM = NUM_NODE_FEATURES + EMB_DIMS["node"] + EMB_DIMS["dag"] + EMB_DIMS["glob"]  # 29

LANE = 128        # lane width; row count is padded to a multiple of this
MAX_TM = 4096     # lanes per grid step for large T (keeps >=2 steps on big inputs)


def _round_up(x, m):
    return ((x + m - 1) // m) * m


def _leaky_relu(x):
    # max(x, 0.01*x) == LeakyReLU(0.01): one vmul + one vmax on the VPU.
    return jnp.maximum(x, 0.01 * x)


# ---------------------------------------------------------------------------
# Pallas kernel: fused 3-layer MLP in transposed (batch-on-lanes) layout.
#   x_ref : (INPUT_DIM, TM)   rows of node_inputs live on the lane axis
#   w1    : (H1, INPUT_DIM)   b1: (H1, 1)
#   w2    : (H2, H1)          b2: (H2, 1)
#   w3    : (H2, 1)  (column) b3: (1, 1)
#   o_ref : (1, TM)           lane-dense scores
# ---------------------------------------------------------------------------
def mlp_score_kernel(x_ref, w1_ref, b1_ref, w2_ref, b2_ref, w3_ref, b3_ref, o_ref):
    x = x_ref[...]                                                                   # (D, TM)
    h = jnp.dot(w1_ref[...], x, preferred_element_type=jnp.float32) + b1_ref[...]   # (H1, TM)
    h = _leaky_relu(h)
    h = jnp.dot(w2_ref[...], h, preferred_element_type=jnp.float32) + b2_ref[...]   # (H2, TM)
    h = _leaky_relu(h)
    # Final 16 -> 1 layer: VPU multiply + sublane reduce (avoids an N=1 MXU op)
    o_ref[...] = jnp.sum(h * w3_ref[...], axis=0, keepdims=True) + b3_ref[...]      # (1, TM)


def mlp_score_pallas(node_inputs_t, params):
    """node_inputs_t: [INPUT_DIM, T] f32 -> scores [T] f32 (== mlp_score(x).squeeze(-1))."""
    w1, b1, w2, b2, w3, b3 = params
    D, T = node_inputs_t.shape

    T_pad = _round_up(max(T, 1), LANE)
    if T_pad <= MAX_TM:
        tm = T_pad                              # single grid step for small T
    else:
        tm = MAX_TM
        T_pad = _round_up(T, tm)

    x_pad = jnp.pad(node_inputs_t, ((0, 0), (0, T_pad - T)))

    out = pl.pallas_call(
        mlp_score_kernel,
        out_shape=jax.ShapeDtypeStruct((1, T_pad), jnp.float32),
        grid_spec=pl.GridSpec(
            grid=(T_pad // tm,),
            in_specs=[
                pl.BlockSpec((D, tm), lambda i: (0, i)),         # x tile (rows on lanes)
                pl.BlockSpec((H1, D), lambda i: (0, 0)),         # W1 (VMEM-resident)
                pl.BlockSpec((H1, 1), lambda i: (0, 0)),         # b1
                pl.BlockSpec((H2, H1), lambda i: (0, 0)),        # W2
                pl.BlockSpec((H2, 1), lambda i: (0, 0)),         # b2
                pl.BlockSpec((H2, 1), lambda i: (0, 0)),         # W3 (column)
                pl.BlockSpec((1, 1), lambda i: (0, 0)),          # b3
            ],
            out_specs=pl.BlockSpec((1, tm), lambda i: (0, i)),   # lane-dense output
        ),
        compiler_params=pltpu.CompilerParams(dimension_semantics=("parallel",)),
    )(x_pad, w1, b1, w2, b2, w3, b3)
    return out[0, :T]


# ---------------------------------------------------------------------------
# Parameter init (deterministic; mirrors PyTorch nn.Linear default init).
# Weights are stored (out_dim, in_dim) like torch; biases as (out_dim, 1)
# columns and the last weight as a (H2, 1) column for the in-kernel reduce.
# ---------------------------------------------------------------------------
def init_mlp_params(key):
    dims = [INPUT_DIM] + HID_DIMS + [1]
    params = []
    for fan_in, fan_out in zip(dims[:-1], dims[1:]):
        key, kw, kb = jax.random.split(key, 3)
        bound = 1.0 / np.sqrt(fan_in)
        w = jax.random.uniform(kw, (fan_out, fan_in), jnp.float32, -bound, bound)
        b = jax.random.uniform(kb, (fan_out, 1), jnp.float32, -bound, bound)
        params += [w, b]
    w1, b1, w2, b2, w3, b3 = params
    return (w1, b1, w2, b2, w3.T, b3)        # w3 stored as (H2, 1) column


# ---------------------------------------------------------------------------
# Forward pass (semantics of StagePolicyNetwork.forward, 'num_stage_acts' present)
# ---------------------------------------------------------------------------
def stage_policy_forward(dag_batch, h_dict, params):
    # Data-dependent shapes -> resolve masks / repeat counts with concrete numpy.
    # TODO(synk): fuse these gathers into the Pallas kernel via scalar prefetch
    #             (pl.Element row gather on VMEM tables) if end-to-end jit is needed.
    stage_mask = np.asarray(dag_batch["stage_mask"])                  # [N] bool
    batch = np.asarray(dag_batch["batch"])                            # [N] graph id
    num_stage_acts = np.asarray(dag_batch["num_stage_acts"])          # per row of h_glob

    node_idx = np.flatnonzero(stage_mask)                             # [T]
    batch_masked = batch[node_idx]                                    # [T]
    glob_row = np.repeat(np.arange(h_dict["glob"].shape[0]), num_stage_acts)  # [T]

    x = jnp.take(jnp.asarray(dag_batch["x"]), node_idx, axis=0)       # [T, F]
    h_node = jnp.take(h_dict["node"], node_idx, axis=0)               # [T, emb_node]
    h_dag_rpt = jnp.take(h_dict["dag"], batch_masked, axis=0)         # [T, emb_dag]
    h_glob_rpt = jnp.take(h_dict["glob"], glob_row, axis=0)           # [T, emb_glob]

    node_inputs = jnp.concatenate([x, h_node, h_dag_rpt, h_glob_rpt], axis=1)  # [T, D]
    node_inputs_t = node_inputs.T.astype(jnp.float32)                 # [D, T] (rows -> lanes)

    return mlp_score_pallas(node_inputs_t, params)                    # [T]


# Pure-JAX reference of the MLP (for correctness check only).
def _mlp_ref(x, params):                        # x: [T, D]
    w1, b1, w2, b2, w3c, b3 = params
    h = _leaky_relu(x @ w1.T + b1[:, 0])
    h = _leaky_relu(h @ w2.T + b2[:, 0])
    return h @ w3c[:, 0] + b3[0, 0]


# ---------------------------------------------------------------------------
# Main
# ---------------------------------------------------------------------------
if __name__ == "__main__":
    key = jax.random.PRNGKey(0)
    k_params, k_x, k_node, k_dag, k_glob, k_mask = jax.random.split(key, 6)

    params = init_mlp_params(k_params)

    # Synthetic dag_batch: 3 graphs with variable node counts.
    num_graphs = 3
    nodes_per_graph = np.array([6, 4, 8])
    N = int(nodes_per_graph.sum())
    batch = np.repeat(np.arange(num_graphs), nodes_per_graph)

    x_nodes = jax.random.normal(k_x, (N, NUM_NODE_FEATURES), jnp.float32)
    h_node = jax.random.normal(k_node, (N, EMB_DIMS["node"]), jnp.float32)
    h_dag = jax.random.normal(k_dag, (num_graphs, EMB_DIMS["dag"]), jnp.float32)
    h_glob = jax.random.normal(k_glob, (num_graphs, EMB_DIMS["glob"]), jnp.float32)

    stage_mask = np.array(jax.random.bernoulli(k_mask, 0.6, (N,)))     # writable copy
    stage_mask[0] = True                                               # ensure non-empty
    num_stage_acts = np.array(
        [int(stage_mask[batch == g].sum()) for g in range(num_graphs)], dtype=np.int32
    )

    dag_batch = {
        "x": x_nodes,
        "stage_mask": stage_mask,
        "batch": batch,
        "num_stage_acts": num_stage_acts,
    }
    h_dict = {"node": h_node, "dag": h_dag, "glob": h_glob}

    scores = stage_policy_forward(dag_batch, h_dict, params)
    scores = jax.block_until_ready(scores)

    # Sanity check against a pure-JAX reference of the same forward pass.
    node_idx = np.flatnonzero(stage_mask)
    bm = batch[node_idx]
    glob_row = np.repeat(np.arange(num_graphs), num_stage_acts)
    ref_inputs = jnp.concatenate(
        [
            jnp.take(x_nodes, node_idx, axis=0),
            jnp.take(h_node, node_idx, axis=0),
            jnp.take(h_dag, bm, axis=0),
            jnp.take(h_glob, glob_row, axis=0),
        ],
        axis=1,
    ).astype(jnp.float32)
    ref_scores = _mlp_ref(ref_inputs, params)

    expected_T = int(node_idx.shape[0])
    assert scores.shape == (expected_T,), scores.shape
    np.testing.assert_allclose(
        np.asarray(scores), np.asarray(ref_scores), rtol=1e-5, atol=1e-5
    )

    print("KERNEL_OK")
</pallas_src>

<mosaic_0001>
module attributes {stable_mosaic.version = 11 : i64} {
  func.func @mlp_score_kernel(%arg0: i32, %arg1: memref<29x128xf32, #tpu.memory_space<vmem>>, %arg2: memref<32x29xf32, #tpu.memory_space<vmem>>, %arg3: memref<32x1xf32, #tpu.memory_space<vmem>>, %arg4: memref<16x32xf32, #tpu.memory_space<vmem>>, %arg5: memref<16x1xf32, #tpu.memory_space<vmem>>, %arg6: memref<16x1xf32, #tpu.memory_space<vmem>>, %arg7: memref<1x1xf32, #tpu.memory_space<vmem>>, %arg8: memref<1x128xf32, #tpu.memory_space<vmem>>) attributes {dimension_semantics = [#tpu.dimension_semantics<parallel>], iteration_bounds = array<i64: 1>, scalar_prefetch = 0 : i64, scratch_operands = 0 : i64, tpu.core_type = #tpu.core_type<tc>, window_params = [{transform_indices = @transform_0, window_bounds = array<i64: 29, 128>}, {pipeline_mode = #tpu.pipeline_mode<synchronous>, transform_indices = @transform_1, window_bounds = array<i64: 32, 29>}, {pipeline_mode = #tpu.pipeline_mode<synchronous>, transform_indices = @transform_2, window_bounds = array<i64: 32, 1>}, {pipeline_mode = #tpu.pipeline_mode<synchronous>, transform_indices = @transform_3, window_bounds = array<i64: 16, 32>}, {pipeline_mode = #tpu.pipeline_mode<synchronous>, transform_indices = @transform_4, window_bounds = array<i64: 16, 1>}, {pipeline_mode = #tpu.pipeline_mode<synchronous>, transform_indices = @transform_5, window_bounds = array<i64: 16, 1>}, {pipeline_mode = #tpu.pipeline_mode<synchronous>, transform_indices = @transform_6, window_bounds = array<i64: 1, 1>}, {transform_indices = @transform_7, window_bounds = array<i64: 1, 128>}]} {
    %c0 = arith.constant 0 : index
    %c0_0 = arith.constant 0 : index
    %0 = vector.load %arg1[%c0, %c0_0] : memref<29x128xf32, #tpu.memory_space<vmem>>, vector<29x128xf32>
    %c0_1 = arith.constant 0 : index
    %c0_2 = arith.constant 0 : index
    %1 = vector.load %arg2[%c0_1, %c0_2] : memref<32x29xf32, #tpu.memory_space<vmem>>, vector<32x29xf32>
    %cst = arith.constant dense<0.000000e+00> : vector<32x128xf32>
    %2 = tpu.matmul %1, %0, %cst {dimension_numbers = #tpu.dot_dimension_numbers<[1], [0], [0], [1], [0, 0, 1, 1], [], []>} : vector<32x29xf32>, vector<29x128xf32>, vector<32x128xf32> -> vector<32x128xf32>
    %c0_3 = arith.constant 0 : index
    %c0_4 = arith.constant 0 : index
    %3 = vector.load %arg3[%c0_3, %c0_4] : memref<32x1xf32, #tpu.memory_space<vmem>>, vector<32x1xf32>
    %4 = vector.broadcast %3 : vector<32x1xf32> to vector<32x128xf32>
    %5 = arith.addf %2, %4 : vector<32x128xf32>
    %cst_5 = arith.constant 0.00999999977 : f32
    %6 = vector.broadcast %cst_5 : f32 to vector<32x128xf32>
    %7 = arith.mulf %6, %5 : vector<32x128xf32>
    %8 = arith.maximumf %5, %7 : vector<32x128xf32>
    %c0_6 = arith.constant 0 : index
    %c0_7 = arith.constant 0 : index
    %9 = vector.load %arg4[%c0_6, %c0_7] : memref<16x32xf32, #tpu.memory_space<vmem>>, vector<16x32xf32>
    %cst_8 = arith.constant dense<0.000000e+00> : vector<16x128xf32>
    %10 = tpu.matmul %9, %8, %cst_8 {dimension_numbers = #tpu.dot_dimension_numbers<[1], [0], [0], [1], [0, 0, 1, 1], [], []>} : vector<16x32xf32>, vector<32x128xf32>, vector<16x128xf32> -> vector<16x128xf32>
    %c0_9 = arith.constant 0 : index
    %c0_10 = arith.constant 0 : index
    %11 = vector.load %arg5[%c0_9, %c0_10] : memref<16x1xf32, #tpu.memory_space<vmem>>, vector<16x1xf32>
    %12 = vector.broadcast %11 : vector<16x1xf32> to vector<16x128xf32>
    %13 = arith.addf %10, %12 : vector<16x128xf32>
    %cst_11 = arith.constant 0.00999999977 : f32
    %14 = vector.broadcast %cst_11 : f32 to vector<16x128xf32>
    %15 = arith.mulf %14, %13 : vector<16x128xf32>
    %16 = arith.maximumf %13, %15 : vector<16x128xf32>
    %c0_12 = arith.constant 0 : index
    %c0_13 = arith.constant 0 : index
    %17 = vector.load %arg6[%c0_12, %c0_13] : memref<16x1xf32, #tpu.memory_space<vmem>>, vector<16x1xf32>
    %18 = vector.broadcast %17 : vector<16x1xf32> to vector<16x128xf32>
    %19 = arith.mulf %16, %18 : vector<16x128xf32>
    %cst_14 = arith.constant dense<0.000000e+00> : vector<128xf32>
    %20 = vector.multi_reduction <add>, %19, %cst_14 [0] : vector<16x128xf32> to vector<128xf32>
    %21 = vector.shape_cast %20 : vector<128xf32> to vector<1x128xf32>
    %c0_15 = arith.constant 0 : index
    %c0_16 = arith.constant 0 : index
    %22 = vector.load %arg7[%c0_15, %c0_16] : memref<1x1xf32, #tpu.memory_space<vmem>>, vector<1x1xf32>
    %23 = vector.broadcast %22 : vector<1x1xf32> to vector<1x128xf32>
    %24 = arith.addf %21, %23 : vector<1x128xf32>
    %c0_17 = arith.constant 0 : index
    %c0_18 = arith.constant 0 : index
    %25 = vector.load %arg8[%c0_17, %c0_18] : memref<1x128xf32, #tpu.memory_space<vmem>>, vector<1x128xf32>
    tpu.vector_store %arg8[%c0_17, %c0_18], %24 {strides = array<i32>} : memref<1x128xf32, #tpu.memory_space<vmem>>, vector<1x128xf32>,
    return
  }
  func.func @transform_0(%arg0: i32) -> (i32, i32) {
    %c0_i32 = arith.constant 0 : i32
    %c0_i32_0 = arith.constant 0 : i32
    return %c0_i32, %arg0 : i32, i32
  }
  func.func @transform_1(%arg0: i32) -> (i32, i32) {
    %c0_i32 = arith.constant 0 : i32
    %c0_i32_0 = arith.constant 0 : i32
    %c0_i32_1 = arith.constant 0 : i32
    return %c0_i32, %c0_i32_0 : i32, i32
  }
  func.func @transform_2(%arg0: i32) -> (i32, i32) {
    %c0_i32 = arith.constant 0 : i32
    %c0_i32_0 = arith.constant 0 : i32
    %c0_i32_1 = arith.constant 0 : i32
    return %c0_i32, %c0_i32_0 : i32, i32
  }
  func.func @transform_3(%arg0: i32) -> (i32, i32) {
    %c0_i32 = arith.constant 0 : i32
    %c0_i32_0 = arith.constant 0 : i32
    %c0_i32_1 = arith.constant 0 : i32
    return %c0_i32, %c0_i32_0 : i32, i32
  }
  func.func @transform_4(%arg0: i32) -> (i32, i32) {
    %c0_i32 = arith.constant 0 : i32
    %c0_i32_0 = arith.constant 0 : i32
    %c0_i32_1 = arith.constant 0 : i32
    return %c0_i32, %c0_i32_0 : i32, i32
  }
  func.func @transform_5(%arg0: i32) -> (i32, i32) {
    %c0_i32 = arith.constant 0 : i32
    %c0_i32_0 = arith.constant 0 : i32
    %c0_i32_1 = arith.constant 0 : i32
    return %c0_i32, %c0_i32_0 : i32, i32
  }
  func.func @transform_6(%arg0: i32) -> (i32, i32) {
    %c0_i32 = arith.constant 0 : i32
    %c0_i32_0 = arith.constant 0 : i32
    %c0_i32_1 = arith.constant 0 : i32
    return %c0_i32, %c0_i32_0 : i32, i32
  }
  func.func @transform_7(%arg0: i32) -> (i32, i32) {
    %c0_i32 = arith.constant 0 : i32
    %c0_i32_0 = arith.constant 0 : i32
    return %c0_i32, %arg0 : i32, i32
  }
}

</mosaic_0001>

<llo_original>
// kernel: tpu_custom_call.1
$region0: #{tpu_custom_call.1}
  #allocation0 [shape = 'u32[]', space=smem, size = 0x4, offset = 0x4, fixed_abs, tag = 'smem constant byte address 0x4 - core index']
  #allocation1 [shape = 'u32[144,128]{1,0:T(1,128)}', space=vmem, size = 0x12000, scoped, tag = 'internal scratch']
  #allocation2 [shape = 'f32[1,1]{1,0:T(1,128)S(1)}', space=vmem, size = 0x200, scoped, tag = 'scoped memory for tpu_custom_call.1']
  %s0 = inlined_call_operand.vmem [shape: f32[29,128], index: 0, kind: input, shape index: {}]
  %s1 = inlined_call_operand.vmem [shape: f32[32,29], index: 1, kind: input, shape index: {}]
  %s2 = inlined_call_operand.vmem [shape: f32[32,1], index: 2, kind: input, shape index: {}]
  %s3 = inlined_call_operand.vmem [shape: f32[16,32], index: 3, kind: input, shape index: {}]
  %s4 = inlined_call_operand.vmem [shape: f32[16,1], index: 4, kind: input, shape index: {}]
  %s5 = inlined_call_operand.vmem [shape: f32[16,1], index: 5, kind: input, shape index: {}]
  %s6 = inlined_call_operand.<no memory space> [shape: f32[1,1], index: 6, kind: input, shape index: {}]
  %s7 = inlined_call_operand.hbm [shape: f32[1,128], index: 7, kind: output, shape index: {}]
  %s8 = sld [smem:[#allocation0]]
  $region38: #{tpu_custom_call.1} parent=0
    _
  %s10 = ssub.s32 1, %s8
  %s11 = scalar_select 0, %s10, %s8
  %v12 = vstv %s6
  %13 = vst [vmem:[#allocation2] sm:$0x1] %v12
  $region1: #{tpu_custom_call.1} parent=0
    #allocation3 [shape = 'u8[512]{0}', space=vmem, size = 0x400, scoped, tag = 'output window, operand 0, single buffered']
    #allocation4 [shape = 's32[1]{0}', space=sflag, size = 0x4, scoped, tag = 'scoped memory for tpu_custom_call.1']
    %14 = vsyncpa [#allocation4], 0
    // Predicated region
    $region2: #{tpu_custom_call.1} parent=1 // pred_check
      _
    $region3: #{tpu_custom_call.1} parent=1 // pred_check_branch
      %16 = sbr.rel (0) target = $region5
    $region4: #{tpu_custom_call.1} parent=1 // pred_region
      _
    $region5: #{tpu_custom_call.1} parent=1 // pred_fallthru
      _
    // Predicated region
    $region6: #{tpu_custom_call.1} parent=1 // pred_check
      _
    $region7: #{tpu_custom_call.1} parent=1 // pred_check_branch
      %18 = sbr.rel (0) target = $region9
    $region8: #{tpu_custom_call.1} parent=1 // pred_region
      _
    $region9: #{tpu_custom_call.1} parent=1 // pred_fallthru
      _
    // Predicated region
    $region10: #{tpu_custom_call.1} parent=1 // pred_check
      _
    $region11: #{tpu_custom_call.1} parent=1 // pred_check_branch
      %20 = sbr.rel (0) target = $region13
    $region12: #{tpu_custom_call.1} parent=1 // pred_region
      _
    $region13: #{tpu_custom_call.1} parent=1 // pred_fallthru
      _
    // Predicated region
    $region14: #{tpu_custom_call.1} parent=1 // pred_check
      _
    $region15: #{tpu_custom_call.1} parent=1 // pred_check_branch
      %22 = sbr.rel (0) target = $region17
    $region16: #{tpu_custom_call.1} parent=1 // pred_region
      _
    $region17: #{tpu_custom_call.1} parent=1 // pred_fallthru
      _
    // Predicated region
    $region18: #{tpu_custom_call.1} parent=1 // pred_check
      _
    $region19: #{tpu_custom_call.1} parent=1 // pred_check_branch
      %24 = sbr.rel (0) target = $region21
    $region20: #{tpu_custom_call.1} parent=1 // pred_region
      _
    $region21: #{tpu_custom_call.1} parent=1 // pred_fallthru
      _
    // Predicated region
    $region22: #{tpu_custom_call.1} parent=1 // pred_check
      _
    $region23: #{tpu_custom_call.1} parent=1 // pred_check_branch
      %26 = sbr.rel (0) target = $region25
    $region24: #{tpu_custom_call.1} parent=1 // pred_region
      _
    $region25: #{tpu_custom_call.1} parent=1 // pred_fallthru
      _
    // Predicated region
    $region26: #{tpu_custom_call.1} parent=1 // pred_check
      _
    $region27: #{tpu_custom_call.1} parent=1 // pred_check_branch
      %28 = sbr.rel (0) target = $region29
    $region28: #{tpu_custom_call.1} parent=1 // pred_region
      _
    $region29: #{tpu_custom_call.1} parent=1 // pred_fallthru
      _
    %v29 = vld [vmem:[%s0] sm:$0xff]
    %v30 = vld [vmem:[%s0 + $0x8] sm:$0xff]
    %v31 = vld [vmem:[%s0 + $0x10] sm:$0xff]
    %v32 = vld [vmem:[%s0 + $0x18] sm:$0x1f]
    %v33 = vld [vmem:[%s1] sm:$0xff]
    %v34 = vld [vmem:[%s1 + $0x8] sm:$0xff]
    %v35 = vld [vmem:[%s1 + $0x10] sm:$0xff]
    %v36 = vld [vmem:[%s1 + $0x18] sm:$0xff]
    %v37 = vld [vmem:[%s2] sm:$0xff]
    %v38 = vld [vmem:[%s2 + $0x8] sm:$0xff]
    %v39 = vld [vmem:[%s2 + $0x10] sm:$0xff]
    %v40 = vld [vmem:[%s2 + $0x18] sm:$0xff]
    %42 = vset.pattern.permute.xlu0 0
    %43 = vperm.xlu0 %42, %v37
    %v44 = vpop.permute.xlu0 %43
    %47 = vset.pattern.permute.xlu0 0
    %48 = vperm.xlu0 %47, %v38
    %v49 = vpop.permute.xlu0 %48
    %52 = vset.pattern.permute.xlu0 0
    %53 = vperm.xlu0 %52, %v39
    %v54 = vpop.permute.xlu0 %53
    %57 = vset.pattern.permute.xlu0 0
    %58 = vperm.xlu0 %57, %v40
    %v59 = vpop.permute.xlu0 %58
    %vm61 = vcmask 236544
    %v63 = vsel %vm61, %v33, 0
    %v66 = vsel %vm61, %v34, 0
    %v69 = vsel %vm61, %v35, 0
    %v72 = vsel %vm61, %v36, 0
    %vm74 = vcmask 1044480
    %v76 = vsel %vm74, %v32, 0
    %78 = vmatprep.subr.mxu0 0.0
    %79 = vmatpush1.msra.mxu0 %v29
    %80 = vmatprep.subr.mxu0 0.0
    %81 = vmatpush1.msra.mxu0 %v30
    %82 = vmatprep.subr.mxu0 0.0
    %83 = vmatpush1.msra.mxu0 %v31
    %84 = vmatprep.subr.mxu0 0.0
    %85 = vmatpush1.msra.mxu0 %v76
    %86 = vmatprep.subr.mxu0 0.0
    %87 = vmatpush1.msra.mxu0 0.0
    %88 = vmatprep.subr.mxu0 0.0
    %89 = vmatpush1.msra.mxu0 0.0
    %90 = vmatprep.subr.mxu0 0.0
    %91 = vmatpush1.msra.mxu0 0.0
    %92 = vmatprep.subr.mxu0 0.0
    %93 = vmatpush1.msra.mxu0 0.0
    %94 = vmatprep.subr.mxu0 0.0
    %95 = vmatpush1.msra.mxu0 0.0
    %96 = vmatprep.subr.mxu0 0.0
    %97 = vmatpush1.msra.mxu0 0.0
    %98 = vmatprep.subr.mxu0 0.0
    %99 = vmatpush1.msra.mxu0 0.0
    %100 = vmatprep.subr.mxu0 0.0
    %101 = vmatpush1.msra.mxu0 0.0
    %102 = vmatprep.subr.mxu0 0.0
    %103 = vmatpush1.msra.mxu0 0.0
    %104 = vmatprep.subr.mxu0 0.0
    %105 = vmatpush1.msra.mxu0 0.0
    %106 = vmatprep.subr.mxu0 0.0
    %107 = vmatpush1.msra.mxu0 0.0
    %108 = vmatprep.subr.mxu0 0.0
    %109 = vmatpush1.msra.mxu0 0.0
    %110 = vmatprep.subr.mxu0 0.0
    %111 = vmatpush1.msra.mxu0 0.0
    %112 = vmatprep.subr.mxu0 0.0
    %113 = vmatpush1.msra.mxu0 0.0
    %114 = vmatprep.subr.mxu0 0.0
    %115 = vmatpush1.msra.mxu0 0.0
    %116 = vmatprep.subr.mxu0 0.0
    %117 = vmatpush1.msra.mxu0 0.0
    %118 = vmatprep.subr.mxu0 0.0
    %119 = vmatpush1.msra.mxu0 0.0
    %120 = vmatprep.subr.mxu0 0.0
    %121 = vmatpush1.msra.mxu0 0.0
    %122 = vmatprep.subr.mxu0 0.0
    %123 = vmatpush1.msra.mxu0 0.0
    %124 = vmatprep.subr.mxu0 0.0
    %125 = vmatpush1.msra.mxu0 0.0
    %126 = vmatprep.subr.mxu0 0.0
    %127 = vmatpush1.msra.mxu0 0.0
    %128 = vmatprep.subr.mxu0 0.0
    %129 = vmatpush1.msra.mxu0 0.0
    %130 = vmatprep.subr.mxu0 0.0
    %131 = vmatpush1.msra.mxu0 0.0
    %132 = vmatprep.subr.mxu0 0.0
    %133 = vmatpush1.msra.mxu0 0.0
    %134 = vmatprep.subr.mxu0 0.0
    %135 = vmatpush1.msra.mxu0 0.0
    %136 = vmatprep.subr.mxu0 0.0
    %137 = vmatpush1.msra.mxu0 0.0
    %138 = vmatprep.subr.mxu0 0.0
    %139 = vmatpush1.msra.mxu0 0.0
    %140 = vmatprep.subr.mxu0 0.0
    %141 = vmatpush1.msra.mxu0 0.0
    %142 = vmatprep.mubr.f32.mxu0 0.0
    %143 = vmatmul.mubr.f32.gmra.mrb[0].mxu0 %v63
    %v144 = vpop.f32.mrb[0].mxu0
    %v145 = vadd.f32 %v44, %v144
    %v146 = vpop.f32.mrb[0].mxu0
    %147 = vmatprep.mubr.f32.mxu0 0.0
    %148 = vmatmul.mubr.f32.gmra.mrb[0].mxu0 %v66
    %v149 = vpop.f32.mrb[0].mxu0
    %v150 = vadd.f32 %v49, %v149
    %v151 = vpop.f32.mrb[0].mxu0
    %152 = vmatprep.mubr.f32.mxu0 0.0
    %153 = vmatmul.mubr.f32.gmra.mrb[0].mxu0 %v69
    %v154 = vpop.f32.mrb[0].mxu0
    %v155 = vadd.f32 %v54, %v154
    %v156 = vpop.f32.mrb[0].mxu0
    %157 = vmatprep.mubr.f32.mxu0 0.0
    %158 = vmatmul.mubr.f32.gmra.mrb[0].mxu0 %v72
    %v159 = vpop.f32.mrb[0].mxu0
    %v160 = vadd.f32 %v59, %v159
    %v161 = vpop.f32.mrb[0].mxu0
    %162 = vdwg.mxu0
    %v163 = vmul.f32 %v145, 0.01
    %v164 = vmul.f32 %v150, 0.01
    %v165 = vmul.f32 %v155, 0.01
    %v166 = vmul.f32 %v160, 0.01
    %v167 = vmax.f32 %v145, %v163
    %v168 = vmax.f32 %v150, %v164
    %v169 = vmax.f32 %v155, %v165
    %v170 = vmax.f32 %v160, %v166
    %v171 = vld [vmem:[%s3] sm:$0xff]
    %v172 = vld [vmem:[%s3 + $0x8] sm:$0xff]
    %v173 = vld [vmem:[%s4] sm:$0xff]
    %v174 = vld [vmem:[%s4 + $0x8] sm:$0xff]
    %176 = vset.pattern.permute.xlu0 0
    %177 = vperm.xlu0 %176, %v173
    %v178 = vpop.permute.xlu0 %177
    %181 = vset.pattern.permute.xlu0 0
    %182 = vperm.xlu0 %181, %v174
    %v183 = vpop.permute.xlu0 %182
    %vm185 = vcmask 261120
    %v187 = vsel %vm185, %v171, 0
    %v190 = vsel %vm185, %v172, 0
    %192 = vmatprep.subr.mxu0 0.0
    %193 = vmatpush1.msra.mxu0 %v167
    %194 = vmatprep.subr.mxu0 0.0
    %195 = vmatpush1.msra.mxu0 %v168
    %196 = vmatprep.subr.mxu0 0.0
    %197 = vmatpush1.msra.mxu0 %v169
    %198 = vmatprep.subr.mxu0 0.0
    %199 = vmatpush1.msra.mxu0 %v170
    %200 = vmatprep.subr.mxu0 0.0
    %201 = vmatpush1.msra.mxu0 0.0
    %202 = vmatprep.subr.mxu0 0.0
    %203 = vmatpush1.msra.mxu0 0.0
    %204 = vmatprep.subr.mxu0 0.0
    %205 = vmatpush1.msra.mxu0 0.0
    %206 = vmatprep.subr.mxu0 0.0
    %207 = vmatpush1.msra.mxu0 0.0
    %208 = vmatprep.subr.mxu0 0.0
    %209 = vmatpush1.msra.mxu0 0.0
    %210 = vmatprep.subr.mxu0 0.0
    %211 = vmatpush1.msra.mxu0 0.0
    %212 = vmatprep.subr.mxu0 0.0
    %213 = vmatpush1.msra.mxu0 0.0
    %214 = vmatprep.subr.mxu0 0.0
    %215 = vmatpush1.msra.mxu0 0.0
    %216 = vmatprep.subr.mxu0 0.0
    %217 = vmatpush1.msra.mxu0 0.0
    %218 = vmatprep.subr.mxu0 0.0
    %219 = vmatpush1.msra.mxu0 0.0
    %220 = vmatprep.subr.mxu0 0.0
    %221 = vmatpush1.msra.mxu0 0.0
    %222 = vmatprep.subr.mxu0 0.0
    %223 = vmatpush1.msra.mxu0 0.0
    %224 = vmatprep.subr.mxu0 0.0
    %225 = vmatpush1.msra.mxu0 0.0
    %226 = vmatprep.subr.mxu0 0.0
    %227 = vmatpush1.msra.mxu0 0.0
    %228 = vmatprep.subr.mxu0 0.0
    %229 = vmatpush1.msra.mxu0 0.0
    %230 = vmatprep.subr.mxu0 0.0
    %231 = vmatpush1.msra.mxu0 0.0
    %232 = vmatprep.subr.mxu0 0.0
    %233 = vmatpush1.msra.mxu0 0.0
    %234 = vmatprep.subr.mxu0 0.0
    %235 = vmatpush1.msra.mxu0 0.0
    %236 = vmatprep.subr.mxu0 0.0
    %237 = vmatpush1.msra.mxu0 0.0
    %238 = vmatprep.subr.mxu0 0.0
    %239 = vmatpush1.msra.mxu0 0.0
    %240 = vmatprep.subr.mxu0 0.0
    %241 = vmatpush1.msra.mxu0 0.0
    %242 = vmatprep.subr.mxu0 0.0
    %243 = vmatpush1.msra.mxu0 0.0
    %244 = vmatprep.subr.mxu0 0.0
    %245 = vmatpush1.msra.mxu0 0.0
    %246 = vmatprep.subr.mxu0 0.0
    %247 = vmatpush1.msra.mxu0 0.0
    %248 = vmatprep.subr.mxu0 0.0
    %249 = vmatpush1.msra.mxu0 0.0
    %250 = vmatprep.subr.mxu0 0.0
    %251 = vmatpush1.msra.mxu0 0.0
    %252 = vmatprep.subr.mxu0 0.0
    %253 = vmatpush1.msra.mxu0 0.0
    %254 = vmatprep.subr.mxu0 0.0
    %255 = vmatpush1.msra.mxu0 0.0
    %256 = vmatprep.mubr.f32.mxu0 0.0
    %257 = vmatmul.mubr.f32.gmra.mrb[0].mxu0 %v187
    %v258 = vpop.f32.mrb[0].mxu0
    %v259 = vadd.f32 %v178, %v258
    %v260 = vpop.f32.mrb[0].mxu0
    %261 = vmatprep.mubr.f32.mxu0 0.0
    %262 = vmatmul.mubr.f32.gmra.mrb[0].mxu0 %v190
    %v263 = vpop.f32.mrb[0].mxu0
    %v264 = vadd.f32 %v183, %v263
    %v265 = vpop.f32.mrb[0].mxu0
    %266 = vdwg.mxu0
    %v267 = vmul.f32 %v259, 0.01
    %v268 = vmul.f32 %v264, 0.01
    %v269 = vmax.f32 %v259, %v267
    %v270 = vmax.f32 %v264, %v268
    %v271 = vld [vmem:[%s5] sm:$0xff]
    %v272 = vld [vmem:[%s5 + $0x8] sm:$0xff]
    %274 = vset.pattern.permute.xlu0 0
    %275 = vperm.xlu0 %274, %v271
    %v276 = vpop.permute.xlu0 %275
    %279 = vset.pattern.permute.xlu0 0
    %280 = vperm.xlu0 %279, %v272
    %v281 = vpop.permute.xlu0 %280
    %v283 = vmul.f32 %v269, %v276
    %v284 = vmul.f32 %v270, %v281
    %v285 = vadd.f32 %v283, %v284
    %v286 = vrot.slane %v285, 4
    %v287 = vadd.f32 %v285, %v286
    %v288 = vrot.slane %v287, 2
    %v289 = vadd.f32 %v287, %v288
    %v290 = vrot.slane %v289, 1
    %v291 = vadd.f32 %v289, %v290
    %v292 = vld [vmem:[#allocation2] sm:$0x1]
    %294 = vset.pattern.permute.xlu0 0
    %295 = vperm.xlu0 %294, %v292
    %v296 = vpop.permute.xlu0 %295
    %v298 = vlaneseq
    %v299 = vshrl.u32 %v298, 7
    %v300 = vsub.s32 0, %v299
    %v301 = vrot.slane %v296, %v300
    %v302 = vadd.f32 %v291, %v301
    %303 = vst [vmem:[#allocation3] sm:$0x1] %v302
    // Predicated region
    $region30: #{tpu_custom_call.1} parent=1 // pred_check
      _
    $region31: #{tpu_custom_call.1} parent=1 // pred_check_branch
      %305 = sbr.rel (0) target = $region33
    $region32: #{tpu_custom_call.1} parent=1 // pred_region
      %s307 = ssub.s32 16, 16
      %308 = vsyncadd [#allocation4], %s307
      %s310 = sshll.u32 [#allocation3], 4
      %s311 = int_to_ptr.vmem [resolvable:$true] %s310
      %313 = dma.vmem_to_hbm [thread:$0]  %s311, 16, %s7, [#allocation4]
    $region33: #{tpu_custom_call.1} parent=1 // pred_fallthru
      _
    // Predicated region
    $region34: #{tpu_custom_call.1} parent=1 // pred_check
      _
    $region35: #{tpu_custom_call.1} parent=1 // pred_check_branch
      %315 = sbr.rel (0) target = $region37
    $region36: #{tpu_custom_call.1} parent=1 // pred_region
      %316 = dma.done [#allocation4], 16
    $region37: #{tpu_custom_call.1} parent=1 // pred_fallthru
      _
    %317 = vsyncpa [#allocation4], 1

</llo_original>
